<compile_context>
chip_gen: v7x
topology: tpu7x:2x2x1
jax: 0.10.0
libtpu: 0.0.40
codegen_flags: <defaults>
</compile_context>

<pallas_src>
import numpy as np
import jax
import jax.numpy as jnp
from jax.experimental import pallas as pl
from jax.experimental.pallas import tpu as pltpu


def _round_up(v, m):
    return ((v + m - 1) // m) * m


def fourier_feature_kernel(x_ref, b_ref, phase_ref, out_ref):
    # x_ref    : (TN, D)   VMEM  rows of x (last block may be ragged; OOB rows are
    #                            garbage and their output writes are masked by Pallas)
    # b_ref    : (D, 2F)   VMEM  2*pi*[B | B], resident across the grid
    # phase_ref: (1, 2F)   VMEM  [0..0, pi/2..pi/2], resident across the grid
    # out_ref  : (TN, 2F)  VMEM  sin(x @ b + phase) == [sin(proj) | cos(proj)]
    proj = jnp.dot(x_ref[...], b_ref[...], preferred_element_type=jnp.float32)
    out_ref[...] = jnp.sin(proj + phase_ref[...]).astype(out_ref.dtype)


def fourier_feature_transform(x, B, *, tile_n=4096, out_dtype=jnp.float32):
    """x: [N, input_dim] f32, B: [input_dim, output_dim] f32 -> [N, 2*output_dim]."""
    N, D = x.shape
    D2, F = B.shape
    assert D == D2

    # Host-side (tiny) parameter prep: fold 2*pi and duplicate columns so one
    # lane-dense (D, 2F) matmul produces both sin and cos arguments; the phase
    # row turns sin(theta + pi/2) into cos(theta) for the second half.
    two_pi_B = (2.0 * np.pi) * jnp.asarray(B, dtype=jnp.float32)
    b_cat = jnp.concatenate([two_pi_B, two_pi_B], axis=1)                # (D, 2F)
    phase = jnp.concatenate(
        [jnp.zeros((1, F), jnp.float32),
         jnp.full((1, F), 0.5 * np.pi, jnp.float32)], axis=1)            # (1, 2F)

    # Row tile: multiple of 8 sublanes, big enough to amortize ~0.35us/step
    # grid overhead, capped so the grid keeps >= 2 steps (v7x dual-TC sharding).
    tn = min(tile_n, _round_up(N, 8))
    if N > 16:
        tn = min(tn, _round_up(-(-N // 2), 8))
    tn = max(8, tn)
    grid = pl.cdiv(N, tn)

    cost = pl.CostEstimate(
        flops=2 * N * D * 2 * F,
        transcendentals=N * 2 * F,
        bytes_accessed=N * D * 4 + N * 2 * F * jnp.dtype(out_dtype).itemsize
        + (D + 1) * 2 * F * 4,
    )

    out = pl.pallas_call(
        fourier_feature_kernel,
        out_shape=jax.ShapeDtypeStruct((N, 2 * F), out_dtype),
        grid_spec=pltpu.PrefetchScalarGridSpec(
            num_scalar_prefetch=0,
            grid=(grid,),
            in_specs=[
                pl.BlockSpec((tn, D), lambda i: (i, 0)),        # rows of x
                pl.BlockSpec((D, 2 * F), lambda i: (0, 0)),     # B_cat resident
                pl.BlockSpec((1, 2 * F), lambda i: (0, 0)),     # phase resident
            ],
            out_specs=pl.BlockSpec((tn, 2 * F), lambda i: (i, 0)),
        ),
        compiler_params=pltpu.CompilerParams(
            # Row axis is independent -> shards across both TensorCores on v7x.
            dimension_semantics=("parallel",),
        ),
        cost_estimate=cost,
    )(x.astype(jnp.float32), b_cat, phase)
    return out


def reference(x, B):
    proj = 2.0 * np.pi * (x @ B)
    return jnp.concatenate([jnp.sin(proj), jnp.cos(proj)], axis=-1)


if __name__ == "__main__":
    input_dim = 3
    output_dim = 64
    sigma = 10.0

    key = jax.random.PRNGKey(0)
    kB, kx = jax.random.split(key)

    # Deterministic synthetic parameter, same shape/scale as torch.randn * sigma.
    B = jax.random.normal(kB, (input_dim, output_dim), dtype=jnp.float32) * sigma

    # 1) Same input as the PyTorch snippet (N=1).
    x = jnp.array([[0.1, 0.2, 0.3]], dtype=jnp.float32)
    out = jax.block_until_ready(fourier_feature_transform(x, B))
    ref = reference(x, B)
    assert out.shape == (1, 2 * output_dim), out.shape
    np.testing.assert_allclose(np.asarray(out), np.asarray(ref), rtol=1e-4, atol=1e-4)

    # 2) Larger ragged batch: non-divisible final block handled natively by Pallas
    #    (no host pad of x, no out[:N] slice).
    xb = jax.random.uniform(kx, (300, input_dim), dtype=jnp.float32)
    out_b = jax.block_until_ready(fourier_feature_transform(xb, B, tile_n=128))
    ref_b = reference(xb, B)
    assert out_b.shape == (300, 2 * output_dim), out_b.shape
    np.testing.assert_allclose(np.asarray(out_b), np.asarray(ref_b), rtol=1e-4, atol=1e-4)

    # 3) Default (large) tile path with >=2 grid steps.
    xc = jax.random.uniform(jax.random.PRNGKey(2), (1000, input_dim), dtype=jnp.float32)
    out_c = jax.block_until_ready(fourier_feature_transform(xc, B))
    ref_c = reference(xc, B)
    np.testing.assert_allclose(np.asarray(out_c), np.asarray(ref_c), rtol=1e-4, atol=1e-4)

    print("KERNEL_OK")
</pallas_src>

<mosaic_0001>
module attributes {stable_mosaic.version = 11 : i64} {
  func.func @fourier_feature_kernel(%arg0: i32, %arg1: memref<8x3xf32, #tpu.memory_space<vmem>>, %arg2: memref<3x128xf32, #tpu.memory_space<vmem>>, %arg3: memref<1x128xf32, #tpu.memory_space<vmem>>, %arg4: memref<8x128xf32, #tpu.memory_space<vmem>>) attributes {dimension_semantics = [#tpu.dimension_semantics<parallel>], iteration_bounds = array<i64: 1>, scalar_prefetch = 0 : i64, scratch_operands = 0 : i64, tpu.core_type = #tpu.core_type<tc>, window_params = [{transform_indices = @transform_0, window_bounds = array<i64: 8, 3>}, {pipeline_mode = #tpu.pipeline_mode<synchronous>, transform_indices = @transform_1, window_bounds = array<i64: 3, 128>}, {pipeline_mode = #tpu.pipeline_mode<synchronous>, transform_indices = @transform_2, window_bounds = array<i64: 1, 128>}, {transform_indices = @transform_3, window_bounds = array<i64: 8, 128>}]} {
    %c0 = arith.constant 0 : index
    %c0_0 = arith.constant 0 : index
    %0 = vector.load %arg1[%c0, %c0_0] : memref<8x3xf32, #tpu.memory_space<vmem>>, vector<8x3xf32>
    %c0_1 = arith.constant 0 : index
    %c0_2 = arith.constant 0 : index
    %1 = vector.load %arg2[%c0_1, %c0_2] : memref<3x128xf32, #tpu.memory_space<vmem>>, vector<3x128xf32>
    %cst = arith.constant dense<0.000000e+00> : vector<8x128xf32>
    %2 = tpu.matmul %0, %1, %cst {dimension_numbers = #tpu.dot_dimension_numbers<[1], [0], [0], [1], [0, 0, 1, 1], [], []>} : vector<8x3xf32>, vector<3x128xf32>, vector<8x128xf32> -> vector<8x128xf32>
    %c0_3 = arith.constant 0 : index
    %c0_4 = arith.constant 0 : index
    %3 = vector.load %arg3[%c0_3, %c0_4] : memref<1x128xf32, #tpu.memory_space<vmem>>, vector<1x128xf32>
    %4 = vector.broadcast %3 : vector<1x128xf32> to vector<8x128xf32>
    %5 = arith.addf %2, %4 : vector<8x128xf32>
    %6 = math.sin %5 : vector<8x128xf32>
    %c0_5 = arith.constant 0 : index
    %c0_6 = arith.constant 0 : index
    %7 = vector.load %arg4[%c0_5, %c0_6] : memref<8x128xf32, #tpu.memory_space<vmem>>, vector<8x128xf32>
    tpu.vector_store %arg4[%c0_5, %c0_6], %6 {strides = array<i32>} : memref<8x128xf32, #tpu.memory_space<vmem>>, vector<8x128xf32>,
    return
  }
  func.func @transform_0(%arg0: i32) -> (i32, i32) {
    %c0_i32 = arith.constant 0 : i32
    %c0_i32_0 = arith.constant 0 : i32
    return %arg0, %c0_i32 : i32, i32
  }
  func.func @transform_1(%arg0: i32) -> (i32, i32) {
    %c0_i32 = arith.constant 0 : i32
    %c0_i32_0 = arith.constant 0 : i32
    %c0_i32_1 = arith.constant 0 : i32
    return %c0_i32, %c0_i32_0 : i32, i32
  }
  func.func @transform_2(%arg0: i32) -> (i32, i32) {
    %c0_i32 = arith.constant 0 : i32
    %c0_i32_0 = arith.constant 0 : i32
    %c0_i32_1 = arith.constant 0 : i32
    return %c0_i32, %c0_i32_0 : i32, i32
  }
  func.func @transform_3(%arg0: i32) -> (i32, i32) {
    %c0_i32 = arith.constant 0 : i32
    %c0_i32_0 = arith.constant 0 : i32
    return %arg0, %c0_i32 : i32, i32
  }
}

</mosaic_0001>

<llo_original>
// kernel: tpu_custom_call.1
$region0: #{tpu_custom_call.1}
  #allocation0 [shape = 'u32[]', space=smem, size = 0x4, offset = 0x4, fixed_abs, tag = 'smem constant byte address 0x4 - core index']
  #allocation1 [shape = 'u32[144,128]{1,0:T(1,128)}', space=vmem, size = 0x12000, scoped, tag = 'internal scratch']
  %s0 = inlined_call_operand.hbm [shape: f32[1,3], index: 0, kind: input, shape index: {}]
  %s1 = inlined_call_operand.hbm [shape: f32[3,128], index: 1, kind: input, shape index: {}]
  %s2 = inlined_call_operand.vmem [shape: f32[1,128], index: 2, kind: input, shape index: {}]
  %s3 = inlined_call_operand.hbm [shape: f32[1,128], index: 3, kind: output, shape index: {}]
  %s4 = sld [smem:[#allocation0]]
  $region30: #{tpu_custom_call.1} parent=0
    _
  %s6 = ssub.s32 1, %s4
  %s7 = scalar_select 0, %s6, %s4
  $region1: #{tpu_custom_call.1} parent=0
    #allocation2 [shape = 'u8[4096]{0}', space=vmem, size = 0x1000, scoped, tag = 'input window, operand 0, single buffered']
    #allocation3 [shape = 's32[1]{0}', space=sflag, size = 0x4, scoped, tag = 'scoped memory for tpu_custom_call.1']
    #allocation4 [shape = 's32[1]{0}', space=sflag, size = 0x4, scoped, tag = 'scoped memory for tpu_custom_call.1']
    #allocation5 [shape = 'u8[2048]{0}', space=vmem, size = 0x800, scoped, tag = 'input window, operand 1, single buffered']
    #allocation6 [shape = 's32[1]{0}', space=sflag, size = 0x4, scoped, tag = 'scoped memory for tpu_custom_call.1']
    #allocation7 [shape = 'u8[4096]{0}', space=vmem, size = 0x1000, scoped, tag = 'output window, operand 0, single buffered']
    %8 = vsyncpa [#allocation3], 0
    %9 = vsyncpa [#allocation6], 0
    %10 = vsyncpa [#allocation4], 0
    // Predicated region
    $region2: #{tpu_custom_call.1} parent=1 // pred_check
      _
    $region3: #{tpu_custom_call.1} parent=1 // pred_check_branch
      %12 = sbr.rel (0) target = $region5
    $region4: #{tpu_custom_call.1} parent=1 // pred_region
      %s14 = ssub.s32 128, 16
      %15 = vsyncadd [#allocation3], %s14
      %s16 = sshll.u32 [#allocation2], 4
      %s17 = int_to_ptr.vmem [resolvable:$true] %s16
      %22 = dma.hbm_to_vmem [thread:$0]  %s0, 16, %s17, [#allocation3], 16, 16, 1
    $region5: #{tpu_custom_call.1} parent=1 // pred_fallthru
      _
    // Predicated region
    $region6: #{tpu_custom_call.1} parent=1 // pred_check
      _
    $region7: #{tpu_custom_call.1} parent=1 // pred_check_branch
      %24 = sbr.rel (0) target = $region9
    $region8: #{tpu_custom_call.1} parent=1 // pred_region
      %s26 = ssub.s32 64, 64
      %27 = vsyncadd [#allocation6], %s26
      %s29 = sshll.u32 [#allocation5], 4
      %s30 = int_to_ptr.vmem [resolvable:$true] %s29
      %32 = dma.hbm_to_vmem [thread:$0]  %s1, 64, %s30, [#allocation6]
    $region9: #{tpu_custom_call.1} parent=1 // pred_fallthru
      _
    // Predicated region
    $region10: #{tpu_custom_call.1} parent=1 // pred_check
      _
    $region11: #{tpu_custom_call.1} parent=1 // pred_check_branch
      %34 = sbr.rel (0) target = $region13
    $region12: #{tpu_custom_call.1} parent=1 // pred_region
      _
    $region13: #{tpu_custom_call.1} parent=1 // pred_fallthru
      _
    // Predicated region
    $region14: #{tpu_custom_call.1} parent=1 // pred_check
      _
    $region15: #{tpu_custom_call.1} parent=1 // pred_check_branch
      %36 = sbr.rel (0) target = $region17
    $region16: #{tpu_custom_call.1} parent=1 // pred_region
      %37 = dma.done [#allocation3], 128
    $region17: #{tpu_custom_call.1} parent=1 // pred_fallthru
      _
    // Predicated region
    $region18: #{tpu_custom_call.1} parent=1 // pred_check
      _
    $region19: #{tpu_custom_call.1} parent=1 // pred_check_branch
      %39 = sbr.rel (0) target = $region21
    $region20: #{tpu_custom_call.1} parent=1 // pred_region
      %40 = dma.done [#allocation6], 64
    $region21: #{tpu_custom_call.1} parent=1 // pred_fallthru
      _
    %v41 = vld [vmem:[#allocation2] sm:$0xff]
    %v42 = vld [vmem:[#allocation5] sm:$0x7]
    %v43 = vld [vmem:[%s2] sm:$0x1]
    %v45 = vlaneseq
    %v46 = vshrl.u32 %v45, 7
    %v47 = vsub.s32 0, %v46
    %v48 = vrot.slane %v43, %v47
    %vm50 = vcmask 23552
    %v52 = vsel %vm50, %v41, 0
    %vm54 = vcmask 1042432
    %v56 = vsel %vm54, %v42, 0
    %58 = vmatprep.subr.mxu0 0.0
    %59 = vmatpush1.msra.mxu0 %v56
    %60 = vmatprep.subr.mxu0 0.0
    %61 = vmatpush1.msra.mxu0 0.0
    %62 = vmatprep.subr.mxu0 0.0
    %63 = vmatpush1.msra.mxu0 0.0
    %64 = vmatprep.subr.mxu0 0.0
    %65 = vmatpush1.msra.mxu0 0.0
    %66 = vmatprep.subr.mxu0 0.0
    %67 = vmatpush1.msra.mxu0 0.0
    %68 = vmatprep.subr.mxu0 0.0
    %69 = vmatpush1.msra.mxu0 0.0
    %70 = vmatprep.subr.mxu0 0.0
    %71 = vmatpush1.msra.mxu0 0.0
    %72 = vmatprep.subr.mxu0 0.0
    %73 = vmatpush1.msra.mxu0 0.0
    %74 = vmatprep.subr.mxu0 0.0
    %75 = vmatpush1.msra.mxu0 0.0
    %76 = vmatprep.subr.mxu0 0.0
    %77 = vmatpush1.msra.mxu0 0.0
    %78 = vmatprep.subr.mxu0 0.0
    %79 = vmatpush1.msra.mxu0 0.0
    %80 = vmatprep.subr.mxu0 0.0
    %81 = vmatpush1.msra.mxu0 0.0
    %82 = vmatprep.subr.mxu0 0.0
    %83 = vmatpush1.msra.mxu0 0.0
    %84 = vmatprep.subr.mxu0 0.0
    %85 = vmatpush1.msra.mxu0 0.0
    %86 = vmatprep.subr.mxu0 0.0
    %87 = vmatpush1.msra.mxu0 0.0
    %88 = vmatprep.subr.mxu0 0.0
    %89 = vmatpush1.msra.mxu0 0.0
    %90 = vmatprep.subr.mxu0 0.0
    %91 = vmatpush1.msra.mxu0 0.0
    %92 = vmatprep.subr.mxu0 0.0
    %93 = vmatpush1.msra.mxu0 0.0
    %94 = vmatprep.subr.mxu0 0.0
    %95 = vmatpush1.msra.mxu0 0.0
    %96 = vmatprep.subr.mxu0 0.0
    %97 = vmatpush1.msra.mxu0 0.0
    %98 = vmatprep.subr.mxu0 0.0
    %99 = vmatpush1.msra.mxu0 0.0
    %100 = vmatprep.subr.mxu0 0.0
    %101 = vmatpush1.msra.mxu0 0.0
    %102 = vmatprep.subr.mxu0 0.0
    %103 = vmatpush1.msra.mxu0 0.0
    %104 = vmatprep.subr.mxu0 0.0
    %105 = vmatpush1.msra.mxu0 0.0
    %106 = vmatprep.subr.mxu0 0.0
    %107 = vmatpush1.msra.mxu0 0.0
    %108 = vmatprep.subr.mxu0 0.0
    %109 = vmatpush1.msra.mxu0 0.0
    %110 = vmatprep.subr.mxu0 0.0
    %111 = vmatpush1.msra.mxu0 0.0
    %112 = vmatprep.subr.mxu0 0.0
    %113 = vmatpush1.msra.mxu0 0.0
    %114 = vmatprep.subr.mxu0 0.0
    %115 = vmatpush1.msra.mxu0 0.0
    %116 = vmatprep.subr.mxu0 0.0
    %117 = vmatpush1.msra.mxu0 0.0
    %118 = vmatprep.subr.mxu0 0.0
    %119 = vmatpush1.msra.mxu0 0.0
    %120 = vmatprep.subr.mxu0 0.0
    %121 = vmatpush1.msra.mxu0 0.0
    %122 = vmatprep.mubr.f32.mxu0 0.0
    %123 = vmatmul.mubr.f32.gmra.mrb[0].mxu0 %v52
    %v124 = vpop.f32.mrb[0].mxu0
    %v125 = vadd.f32 %v48, %v124
    %v126 = vpop.f32.mrb[0].mxu0
    %127 = vdwg.mxu0
    %v128 = vand.u32 2147483647, %v125
    %vm129 = vcmp.le.f32.partialorder %v128, 0.7853982
    %vm130 = vcmp.lt.s32.totalorder %v125, 0
    %v131 = vand.u32 %v125, 2139095040
    %v132 = vshrl.u32 %v131, 23
    %v133 = vsub.s32 %v132, 127
    %v134 = vand.u32 2147483647, %v125
    %v135 = vand.u32 %v134, 8388607
    %v136 = vor.u32 %v135, 8388608
    %v137 = vsub.s32 0, %v136
    %v138 = vadd.s32 %v133, 1
    %vm139 = vcmp.gt.s32.totalorder %v138, 0
    %v140 = vsel %vm139, %v138, 0
    %v141 = vshrl.u32 %v140, 5
    %v142 = vand.u32 %v140, 31
    %v143 = vsub.s32 32, %v142
    %v144 = vshrl.u32 683565275, %v143
    %v145 = vshll.u32 683565275, %v142
    %v146 = vshrl.u32 2475754826, %v143
    %v147 = vor.u32 %v145, %v146
    %v148 = vshll.u32 2475754826, %v142
    %v149 = vshrl.u32 2131351028, %v143
    %v150 = vor.u32 %v148, %v149
    %v151 = vshll.u32 2131351028, %v142
    %v152 = vshrl.u32 2102212464, %v143
    %v153 = vor.u32 %v151, %v152
    %v154 = vshll.u32 2102212464, %v142
    %v155 = vshrl.u32 920167782, %v143
    %v156 = vor.u32 %v154, %v155
    %v157 = vshll.u32 920167782, %v142
    %v158 = vshrl.u32 1326507024, %v143
    %v159 = vor.u32 %v157, %v158
    %vm160 = vcmp.lt.s32.totalorder %v141, 1
    %vm161 = vcmp.lt.s32.totalorder %v141, 2
    %vm162 = vcmp.lt.s32.totalorder %v141, 3
    %vm163 = vcmp.lt.s32.totalorder %v141, 4
    %v164 = vsel %vm160, %v144, %v147
    %v165 = vsel %vm163, %v153, 2102212464
    %v166 = vsel %vm162, %v150, %v165
    %v167 = vsel %vm161, %v164, %v166
    %v168 = vsel %vm160, %v147, %v150
    %v169 = vsel %vm163, %v156, 920167782
    %v170 = vsel %vm162, %v153, %v169
    %v171 = vsel %vm161, %v168, %v170
    %v172 = vsel %vm160, %v150, %v153
    %v173 = vsel %vm163, %v159, 1326507024
    %v174 = vsel %vm162, %v156, %v173
    %v175 = vsel %vm161, %v172, %v174
    %v176 = vshll.u32 %v136, 8
    %v177 = vmul.u32.u64.compose %v176, %v175
    %v178 = vextract.low.u32 %v177
    %v179 = vextract.high.u32 %v177
    %v180 = vmul.u32.u64.compose %v176, %v171
    %v181 = vextract.low.u32 %v180
    %v182 = vextract.high.u32 %v180
    %v183 = vmul.u32 %v176, %v167
    %v184 = vadd.s32 %v179, %v181
    %vm185 = vc.u32 %v179, %v181
    %v186 = vadd.s32 %v182, 1
    %v187 = vsel %vm185, %v186, %v182
    %v188 = vadd.s32 %v183, %v187
    %v189 = vadd.s32 %v188, 536870912
    %v190 = vshrl.u32 %v189, 30
    %v191 = vshll.u32 %v190, 30
    %v192 = vsub.s32 %v188, %v191
    %vm193 = vcmp.lt.s32.totalorder %v192, 0
    %v194 = vsub.s32 0, %v192
    %v195 = vsel %vm193, %v194, %v192
    %v196 = vclz %v195
    %v197 = vsub.s32 %v196, 2
    %vm198 = vcmp.gt.s32.totalorder 0, %v197
    %v199 = vsel %vm198, 0, %v197
    %v200 = vsub.s32 32, %v199
    %v201 = vshll.u32 %v192, %v199
    %v202 = vshrl.u32 %v184, %v200
    %v203 = vor.u32 %v201, %v202
    %v204 = vsub.s32 4294967266, %v199
    %v205 = vadd.s32 %v204, 127
    %v206 = vshll.u32 %v205, 23
    %v207 = vor.u32 4788187, %v206
    %v208 = vand.u32 2147483647, %v207
    %v210 = vcvt.s32.f32 %v203
    %v211 = vmul.f32 %v210, %v208
    %v212 = vxor.u32 %v211, 2147483648
    %v213 = vsel %vm130, %v212, %v211
    %v214 = vsub.s32 4, %v190
    %v215 = vsel %vm130, %v214, %v190
    %v216 = vsel %vm129, %v125, %v213
    %v217 = vsel %vm129, 0, %v215
    %v218 = vcosq.f32.pop %v216
    %v219 = vsinq.f32.pop %v216
    %vm220 = vweird.f32 %v125
    %v221 = vadd.s32 %v217, 3
    %v222 = vand.u32 %v221, 3
    %vm223 = vcmp.lt.s32.totalorder %v222, 2
    %vm224 = vcmp.eq.s32.totalorder %v222, 0
    %v225 = vxor.u32 %v219, 2147483648
    %v226 = vsel %vm224, %v218, %v225
    %vm227 = vcmp.eq.s32.totalorder %v222, 2
    %v228 = vxor.u32 %v218, 2147483648
    %v229 = vsel %vm227, %v228, %v219
    %v230 = vsel %vm223, %v226, %v229
    %v231 = vsel %vm220, nan, %v230
    %232 = vst [vmem:[#allocation7] sm:$0xff] %v231
    // Predicated region
    $region22: #{tpu_custom_call.1} parent=1 // pred_check
      _
    $region23: #{tpu_custom_call.1} parent=1 // pred_check_branch
      %234 = sbr.rel (0) target = $region25
    $region24: #{tpu_custom_call.1} parent=1 // pred_region
      %s236 = ssub.s32 128, 16
      %237 = vsyncadd [#allocation4], %s236
      %s238 = sshll.u32 [#allocation7], 4
      %s239 = int_to_ptr.vmem [resolvable:$true] %s238
      %244 = dma.vmem_to_hbm [thread:$0]  %s239, 16, %s3, [#allocation4], 16, 16, 1
    $region25: #{tpu_custom_call.1} parent=1 // pred_fallthru
      _
    // Predicated region
    $region26: #{tpu_custom_call.1} parent=1 // pred_check
      _
    $region27: #{tpu_custom_call.1} parent=1 // pred_check_branch
      %246 = sbr.rel (0) target = $region29
    $region28: #{tpu_custom_call.1} parent=1 // pred_region
      %247 = dma.done [#allocation4], 128
    $region29: #{tpu_custom_call.1} parent=1 // pred_fallthru
      _
    %248 = vsyncpa [#allocation3], 1
    %249 = vsyncpa [#allocation6], 1
    %250 = vsyncpa [#allocation4], 1

</llo_original>
